<compile_context>
chip_gen: v7x
topology: tpu7x:2x2x1
jax: 0.10.0
libtpu: 0.0.40
codegen_flags: <defaults>
</compile_context>

<pallas_src>
import functools

import jax
import jax.numpy as jnp
from jax.experimental import pallas as pl
from jax.experimental.pallas import tpu as pltpu

EPS = 1e-6        # eps added inside one_hot()
SMOOTH = 1.0      # BinaryDiceLoss default smooth
# p = 2 (BinaryDiceLoss default) -> denominator uses squares
MAX_LANE_TILE = 2048   # lanes per grid step (multiple of 128); fits all VMEM budgets


def _round_up(x, m):
    return ((x + m - 1) // m) * m


def _dice_kernel(pred_ref, lab_ref, loss_ref, num_acc, den_acc,
                 *, C, tS, S_total, needs_mask):
    # pred_ref: (1, C, tS) bf16 logits  |  lab_ref: (1, 1, tS) int32 class ids
    # loss_ref: (1, 1, C) f32           |  num_acc / den_acc: (1, C) f32 scratch
    j = pl.program_id(1)

    @pl.when(j == 0)
    def _init():
        num_acc[...] = jnp.zeros_like(num_acc)
        den_acc[...] = jnp.zeros_like(den_acc)

    x = pred_ref[...].astype(jnp.float32)            # (1, C, tS)
    lab = lab_ref[...]                               # (1, 1, tS)

    if needs_mask:
        lane = jax.lax.broadcasted_iota(jnp.int32, (1, 1, tS), 2)
        valid = (j * tS + lane) < S_total            # (1, 1, tS) bool
        nvalid = jnp.minimum(tS, S_total - j * tS).astype(jnp.float32)
        x = jnp.where(valid, x, 0.0)                 # neutralize padded logits (pre-exp)
    else:
        valid = None
        nvalid = jnp.float32(tS)

    # numerically-stable softmax over the class (sublane) axis; divide on the EUP
    m = jnp.max(x, axis=1, keepdims=True)
    e = jnp.exp(x - m)
    p = e * pl.reciprocal(jnp.sum(e, axis=1, keepdims=True), approx=True)
    if needs_mask:
        p = jnp.where(valid, p, 0.0)                 # padded pixels contribute nothing

    cls_ids = jax.lax.broadcasted_iota(jnp.int32, (1, C, tS), 1)
    hit = lab == cls_ids
    if needs_mask:
        hit = jnp.logical_and(hit, valid)
    oh = hit.astype(jnp.float32)                     # one-hot WITHOUT the eps

    # per-(n, c) partial reductions over this spatial tile (lane axis)
    sum_p = jnp.sum(p, axis=2)                       # (1, C)
    sum_poh = jnp.sum(p * oh, axis=2)                # (1, C)
    sum_pp = jnp.sum(p * p, axis=2)                  # (1, C)
    count_c = jnp.sum(oh, axis=2)                    # (1, C)

    # t = oh + EPS  =>  sum(p*t) = sum(p*oh) + EPS*sum(p)
    #                   sum(t*t) = (1+2*EPS)*count + EPS^2 * S_valid
    num_acc[...] += sum_poh + EPS * sum_p
    den_acc[...] += sum_pp + (1.0 + 2.0 * EPS) * count_c + (EPS * EPS) * nvalid

    @pl.when(j == pl.num_programs(1) - 1)
    def _finalize():
        loss_nc = 1.0 - (num_acc[...] + SMOOTH) / (den_acc[...] + SMOOTH)   # (1, C)
        loss_ref[...] = loss_nc.reshape(1, 1, C)


def dice_loss(predict, target):
    """predict: (N, C, H, W) float logits; target: (N, H, W) integer labels."""
    N, C, H, W = predict.shape
    S = H * W

    tS = min(_round_up(S, 128), MAX_LANE_TILE)       # lane tile, multiple of 128
    S_pad = _round_up(S, tS)
    n_s_tiles = S_pad // tS
    needs_mask = S_pad != S

    pred = predict.reshape(N, C, S).astype(jnp.bfloat16)   # halve HBM traffic
    lab = target.reshape(N, 1, S).astype(jnp.int32)
    if needs_mask:
        pred = jnp.pad(pred, ((0, 0), (0, 0), (0, S_pad - S)))
        lab = jnp.pad(lab, ((0, 0), (0, 0), (0, S_pad - S)), constant_values=-1)

    kernel = functools.partial(_dice_kernel, C=C, tS=tS, S_total=S,
                               needs_mask=needs_mask)

    loss_nc = pl.pallas_call(
        kernel,
        out_shape=jax.ShapeDtypeStruct((N, 1, C), jnp.float32),
        grid_spec=pltpu.PrefetchScalarGridSpec(
            num_scalar_prefetch=0,
            grid=(N, n_s_tiles),                     # batch parallel, S-reduction last
            in_specs=[
                pl.BlockSpec((1, C, tS), lambda i, j: (i, 0, j)),
                pl.BlockSpec((1, 1, tS), lambda i, j: (i, 0, j)),
            ],
            out_specs=pl.BlockSpec((1, 1, C), lambda i, j: (i, 0, 0)),
            scratch_shapes=[
                pltpu.VMEM((1, C), jnp.float32),     # num accumulator
                pltpu.VMEM((1, C), jnp.float32),     # den accumulator
            ],
        ),
        compiler_params=pltpu.CompilerParams(
            dimension_semantics=("parallel", "arbitrary"),
            vmem_limit_bytes=32 * 1024 * 1024,       # raise v5e's 16 MiB default
        ),
    )(pred, lab)

    # DiceLoss finalize (tiny, plain JAX): mean over batch per class,
    # sum over classes 1..C-1 (ignore_index=None, weight=None), divide by C.
    loss_nc = loss_nc.reshape(N, C)
    per_class = jnp.mean(loss_nc, axis=0)            # (C,)
    total = jnp.sum(per_class[1:])
    return total / C


def _dice_loss_ref(predict, target):
    # Pure-JAX reference mirroring the PyTorch module, evaluated on the same
    # bf16-rounded logits the kernel consumes.
    N, C, H, W = predict.shape
    x = predict.astype(jnp.bfloat16).astype(jnp.float32)
    p = jax.nn.softmax(x, axis=1)
    t = jax.nn.one_hot(target, C, axis=1, dtype=jnp.float32) + EPS
    pf = p.reshape(N, C, -1)
    tf = t.reshape(N, C, -1)
    total = 0.0
    for i in range(1, C):
        num = jnp.sum(pf[:, i] * tf[:, i], axis=1) + SMOOTH
        den = jnp.sum(pf[:, i] ** 2 + tf[:, i] ** 2, axis=1) + SMOOTH
        total = total + jnp.mean(1.0 - num / den)
    return total / C


if __name__ == "__main__":
    key = jax.random.PRNGKey(0)
    k1, k2 = jax.random.split(key)
    N, C, H, W = 2, 4, 16, 16
    predict = jax.random.normal(k1, (N, C, H, W), dtype=jnp.float32)
    target = jax.random.randint(k2, (N, H, W), 0, C, dtype=jnp.int32)

    out = jax.block_until_ready(dice_loss(predict, target))
    ref = jax.block_until_ready(_dice_loss_ref(predict, target))
    # tolerance covers the EUP approx-reciprocal in the in-kernel softmax
    assert jnp.allclose(out, ref, atol=2e-3, rtol=2e-3), (out, ref)
    print("KERNEL_OK")
</pallas_src>

<mosaic_0001>
module attributes {stable_mosaic.version = 11 : i64} {
  func.func @_dice_kernel(%arg0: i32, %arg1: i32, %arg2: memref<1x4x256xbf16, #tpu.memory_space<vmem>>, %arg3: memref<1x1x256xi32, #tpu.memory_space<vmem>>, %arg4: memref<1x1x4xf32, #tpu.memory_space<vmem>>, %arg5: memref<1x4xf32, #tpu.memory_space<vmem>>, %arg6: memref<1x4xf32, #tpu.memory_space<vmem>>) attributes {dimension_semantics = [#tpu.dimension_semantics<parallel>, #tpu.dimension_semantics<arbitrary>], iteration_bounds = array<i64: 2, 1>, scalar_prefetch = 0 : i64, scratch_operands = 2 : i64, tpu.core_type = #tpu.core_type<tc>, window_params = [{transform_indices = @transform_0, window_bounds = array<i64: 1, 4, 256>}, {transform_indices = @transform_1, window_bounds = array<i64: 1, 1, 256>}, {transform_indices = @transform_2, window_bounds = array<i64: 1, 1, 4>}]} {
    %c0_i32 = arith.constant 0 : i32
    %0 = arith.cmpi eq, %arg1, %c0_i32 : i32
    %1 = arith.extui %0 : i1 to i32
    %c0_i32_0 = arith.constant 0 : i32
    %2 = arith.cmpi ne, %1, %c0_i32_0 : i32
    scf.if %2 {
      %cst_25 = arith.constant 0.000000e+00 : f32
      %45 = vector.broadcast %cst_25 : f32 to vector<1x4xf32>
      %c0_26 = arith.constant 0 : index
      %c0_27 = arith.constant 0 : index
      %46 = vector.load %arg5[%c0_26, %c0_27] : memref<1x4xf32, #tpu.memory_space<vmem>>, vector<1x4xf32>
      tpu.vector_store %arg5[%c0_26, %c0_27], %45 {strides = array<i32>} : memref<1x4xf32, #tpu.memory_space<vmem>>, vector<1x4xf32>,
      %cst_28 = arith.constant 0.000000e+00 : f32
      %47 = vector.broadcast %cst_28 : f32 to vector<1x4xf32>
      %c0_29 = arith.constant 0 : index
      %c0_30 = arith.constant 0 : index
      %48 = vector.load %arg6[%c0_29, %c0_30] : memref<1x4xf32, #tpu.memory_space<vmem>>, vector<1x4xf32>
      tpu.vector_store %arg6[%c0_29, %c0_30], %47 {strides = array<i32>} : memref<1x4xf32, #tpu.memory_space<vmem>>, vector<1x4xf32>,
    } else {
    }
    %c0 = arith.constant 0 : index
    %c0_1 = arith.constant 0 : index
    %c0_2 = arith.constant 0 : index
    %3 = vector.load %arg2[%c0, %c0_1, %c0_2] : memref<1x4x256xbf16, #tpu.memory_space<vmem>>, vector<1x4x256xbf16>
    %4 = arith.extf %3 : vector<1x4x256xbf16> to vector<1x4x256xf32>
    %c0_3 = arith.constant 0 : index
    %c0_4 = arith.constant 0 : index
    %c0_5 = arith.constant 0 : index
    %5 = vector.load %arg3[%c0_3, %c0_4, %c0_5] : memref<1x1x256xi32, #tpu.memory_space<vmem>>, vector<1x1x256xi32>
    %cst = arith.constant dense<0xFF800000> : vector<1x256xf32>
    %6 = vector.multi_reduction <maximumf>, %4, %cst [1] : vector<1x4x256xf32> to vector<1x256xf32>
    %7 = vector.shape_cast %6 : vector<1x256xf32> to vector<1x1x256xf32>
    %8 = vector.broadcast %7 : vector<1x1x256xf32> to vector<1x4x256xf32>
    %9 = arith.subf %4, %8 : vector<1x4x256xf32>
    %10 = math.exp %9 : vector<1x4x256xf32>
    %cst_6 = arith.constant dense<0.000000e+00> : vector<1x256xf32>
    %11 = vector.multi_reduction <add>, %10, %cst_6 [1] : vector<1x4x256xf32> to vector<1x256xf32>
    %12 = vector.shape_cast %11 : vector<1x256xf32> to vector<1x1x256xf32>
    %13 = tpu.reciprocal %12 {approx = true} : vector<1x1x256xf32> -> vector<1x1x256xf32>
    %14 = vector.broadcast %13 : vector<1x1x256xf32> to vector<1x4x256xf32>
    %15 = arith.mulf %10, %14 : vector<1x4x256xf32>
    %16 = tpu.iota {dimensions = array<i32: 1>} : vector<1x4x256xi32>
    %17 = vector.broadcast %5 : vector<1x1x256xi32> to vector<1x4x256xi32>
    %18 = arith.cmpi eq, %17, %16 : vector<1x4x256xi32>
    %19 = arith.extui %18 : vector<1x4x256xi1> to vector<1x4x256xi32>
    %20 = arith.sitofp %19 : vector<1x4x256xi32> to vector<1x4x256xf32>
    %cst_7 = arith.constant dense<0.000000e+00> : vector<1x4xf32>
    %21 = vector.multi_reduction <add>, %15, %cst_7 [2] : vector<1x4x256xf32> to vector<1x4xf32>
    %22 = arith.mulf %15, %20 : vector<1x4x256xf32>
    %cst_8 = arith.constant dense<0.000000e+00> : vector<1x4xf32>
    %23 = vector.multi_reduction <add>, %22, %cst_8 [2] : vector<1x4x256xf32> to vector<1x4xf32>
    %24 = arith.mulf %15, %15 : vector<1x4x256xf32>
    %cst_9 = arith.constant dense<0.000000e+00> : vector<1x4xf32>
    %25 = vector.multi_reduction <add>, %24, %cst_9 [2] : vector<1x4x256xf32> to vector<1x4xf32>
    %cst_10 = arith.constant dense<0.000000e+00> : vector<1x4xf32>
    %26 = vector.multi_reduction <add>, %20, %cst_10 [2] : vector<1x4x256xf32> to vector<1x4xf32>
    %c0_11 = arith.constant 0 : index
    %c0_12 = arith.constant 0 : index
    %27 = vector.load %arg5[%c0_11, %c0_12] : memref<1x4xf32, #tpu.memory_space<vmem>>, vector<1x4xf32>
    %cst_13 = arith.constant 9.99999997E-7 : f32
    %28 = vector.broadcast %cst_13 : f32 to vector<1x4xf32>
    %29 = arith.mulf %28, %21 : vector<1x4xf32>
    %30 = arith.addf %23, %29 : vector<1x4xf32>
    %31 = arith.addf %27, %30 : vector<1x4xf32>
    %c0_14 = arith.constant 0 : index
    %c0_15 = arith.constant 0 : index
    %32 = vector.load %arg5[%c0_14, %c0_15] : memref<1x4xf32, #tpu.memory_space<vmem>>, vector<1x4xf32>
    tpu.vector_store %arg5[%c0_14, %c0_15], %31 {strides = array<i32>} : memref<1x4xf32, #tpu.memory_space<vmem>>, vector<1x4xf32>,
    %c0_16 = arith.constant 0 : index
    %c0_17 = arith.constant 0 : index
    %33 = vector.load %arg6[%c0_16, %c0_17] : memref<1x4xf32, #tpu.memory_space<vmem>>, vector<1x4xf32>
    %cst_18 = arith.constant 1.00000203 : f32
    %34 = vector.broadcast %cst_18 : f32 to vector<1x4xf32>
    %35 = arith.mulf %34, %26 : vector<1x4xf32>
    %36 = arith.addf %25, %35 : vector<1x4xf32>
    %cst_19 = arith.constant 9.99999996E-13 : f32
    %cst_20 = arith.constant 2.560000e+02 : f32
    %37 = arith.mulf %cst_19, %cst_20 : f32
    %38 = vector.broadcast %37 : f32 to vector<1x4xf32>
    %39 = arith.addf %36, %38 : vector<1x4xf32>
    %40 = arith.addf %33, %39 : vector<1x4xf32>
    %c0_21 = arith.constant 0 : index
    %c0_22 = arith.constant 0 : index
    %41 = vector.load %arg6[%c0_21, %c0_22] : memref<1x4xf32, #tpu.memory_space<vmem>>, vector<1x4xf32>
    tpu.vector_store %arg6[%c0_21, %c0_22], %40 {strides = array<i32>} : memref<1x4xf32, #tpu.memory_space<vmem>>, vector<1x4xf32>,
    %c0_i32_23 = arith.constant 0 : i32
    %42 = arith.cmpi eq, %arg1, %c0_i32_23 : i32
    %43 = arith.extui %42 : i1 to i32
    %c0_i32_24 = arith.constant 0 : i32
    %44 = arith.cmpi ne, %43, %c0_i32_24 : i32
    scf.if %44 {
      %c0_25 = arith.constant 0 : index
      %c0_26 = arith.constant 0 : index
      %45 = vector.load %arg5[%c0_25, %c0_26] : memref<1x4xf32, #tpu.memory_space<vmem>>, vector<1x4xf32>
      %cst_27 = arith.constant 1.000000e+00 : f32
      %46 = vector.broadcast %cst_27 : f32 to vector<1x4xf32>
      %47 = arith.addf %45, %46 : vector<1x4xf32>
      %c0_28 = arith.constant 0 : index
      %c0_29 = arith.constant 0 : index
      %48 = vector.load %arg6[%c0_28, %c0_29] : memref<1x4xf32, #tpu.memory_space<vmem>>, vector<1x4xf32>
      %cst_30 = arith.constant 1.000000e+00 : f32
      %49 = vector.broadcast %cst_30 : f32 to vector<1x4xf32>
      %50 = arith.addf %48, %49 : vector<1x4xf32>
      %51 = arith.divf %47, %50 : vector<1x4xf32>
      %cst_31 = arith.constant 1.000000e+00 : f32
      %52 = vector.broadcast %cst_31 : f32 to vector<1x4xf32>
      %53 = arith.subf %52, %51 : vector<1x4xf32>
      %54 = vector.shape_cast %53 : vector<1x4xf32> to vector<1x1x4xf32>
      %c0_32 = arith.constant 0 : index
      %c0_33 = arith.constant 0 : index
      %c0_34 = arith.constant 0 : index
      %55 = vector.load %arg4[%c0_32, %c0_33, %c0_34] : memref<1x1x4xf32, #tpu.memory_space<vmem>>, vector<1x1x4xf32>
      tpu.vector_store %arg4[%c0_32, %c0_33, %c0_34], %54 {strides = array<i32>} : memref<1x1x4xf32, #tpu.memory_space<vmem>>, vector<1x1x4xf32>,
    } else {
    }
    return
  }
  func.func @transform_0(%arg0: i32, %arg1: i32) -> (i32, i32, i32) {
    %c0_i32 = arith.constant 0 : i32
    %c0_i32_0 = arith.constant 0 : i32
    return %arg0, %c0_i32, %arg1 : i32, i32, i32
  }
  func.func @transform_1(%arg0: i32, %arg1: i32) -> (i32, i32, i32) {
    %c0_i32 = arith.constant 0 : i32
    %c0_i32_0 = arith.constant 0 : i32
    return %arg0, %c0_i32, %arg1 : i32, i32, i32
  }
  func.func @transform_2(%arg0: i32, %arg1: i32) -> (i32, i32, i32) {
    %c0_i32 = arith.constant 0 : i32
    %c0_i32_0 = arith.constant 0 : i32
    %c0_i32_1 = arith.constant 0 : i32
    return %arg0, %c0_i32, %c0_i32_0 : i32, i32, i32
  }
}

</mosaic_0001>

<llo_original>
// kernel: tpu_custom_call.1
$region0: #{tpu_custom_call.1}
  #allocation0 [shape = 'u32[]', space=smem, size = 0x4, offset = 0x4, fixed_abs, tag = 'smem constant byte address 0x4 - core index']
  #allocation1 [shape = 'u32[144,128]{1,0:T(1,128)}', space=vmem, size = 0x12000, scoped, tag = 'internal scratch']
  #allocation2 [shape = 'f32[1,4]{1,0:T(1,128)}', space=vmem, size = 0x200, scoped, tag = 'scratch operand']
  #allocation3 [shape = 'f32[1,4]{1,0:T(1,128)}', space=vmem, size = 0x200, scoped, tag = 'scratch operand']
  %s0 = inlined_call_operand.hbm [shape: bf16[2,4,256], index: 0, kind: input, shape index: {}]
  %s1 = inlined_call_operand.hbm [shape: s32[2,1,256], index: 1, kind: input, shape index: {}]
  %s2 = inlined_call_operand.hbm [shape: f32[2,1,4], index: 2, kind: output, shape index: {}]
  %s3 = sld [smem:[#allocation0]]
  $region57: #{tpu_custom_call.1} parent=0
    _
  %s5 = ssub.s32 1, %s3
  %s6 = scalar_select 0, %s5, %s3
  $region1: #{tpu_custom_call.1} parent=0
    #allocation4 [shape = 'u8[4096]{0}', space=vmem, size = 0x1000, scoped, tag = 'input window, operand 0']
    #allocation5 [shape = 's32[2]{0}', space=sflag, size = 0x8, scoped, tag = 'scoped memory for tpu_custom_call.1']
    #allocation6 [shape = 's32[2]{0}', space=sflag, size = 0x8, scoped, tag = 'scoped memory for tpu_custom_call.1']
    #allocation7 [shape = 'u8[2048]{0}', space=vmem, size = 0x800, scoped, tag = 'input window, operand 1']
    #allocation8 [shape = 's32[2]{0}', space=sflag, size = 0x8, scoped, tag = 'scoped memory for tpu_custom_call.1']
    #allocation9 [shape = 'u8[1024]{0}', space=vmem, size = 0x400, scoped, tag = 'output window, operand 0']
    %7 = vsyncpa [#allocation5], 0
    %s8 = scalar_lea.sflag [#allocation5], 1
    %9 = vsyncpa %s8, 0
    %10 = vsyncpa [#allocation8], 0
    %s11 = scalar_lea.sflag [#allocation8], 1
    %12 = vsyncpa %s11, 0
    %13 = vsyncpa [#allocation6], 0
    %s14 = scalar_lea.sflag [#allocation6], 1
    %15 = vsyncpa %s14, 0
    loop: start=0, step=1, limit=4
    $region2: #{tpu_custom_call.1} parent=1 // loop_pre_header
      _
    $region3: #{tpu_custom_call.1} parent=1 // loop_header
      %s17 = sphi 0, %s21
      %p18 = scmp.ge.s32.totalorder %s17, 4
      %s24 = sphi 0, %s36
      %s25 = sphi 0, %s32
      %s26 = sphi 0, %s24
      %s27 = sphi 0, %s25
      %s28 = sphi 0, %s26
      %s29 = sphi 0, %s27
      %s41 = sphi 0, %s43
      %s44 = sphi 0, %s41
      %s45 = sphi 0, %s44
      %s61 = sphi 0, %s45
      %s69 = sphi 0, %s71
      %s72 = sphi 0, %s69
      %s73 = sphi 0, %s72
      %s89 = sphi 0, %s73
      %s95 = sphi 0, %s97
      %s98 = sphi 0, %s95
      %s99 = sphi 0, %s98
      %s115 = sphi 0, %s99
    $region4: #{tpu_custom_call.1} parent=1 // loop_header_branch
      %20 = sbr.rel (%p18) target = $region8
    $region5: #{tpu_custom_call.1} parent=1 // loop_body
      %s22 = ssub.s32 %s17, 1
      %s23 = ssub.s32 %s17, 2
      %s30 = sadd.s32 1, %s25
      %p31 = scmp.ge.s32.totalorder %s30, 1
      %s32 = scalar_select %p31, 0, %s30
      %s33 = sadd.s32 1, %s24
      %s34 = scalar_select %p31, %s33, %s24
      %p35 = scmp.ge.s32.totalorder %s34, 2
      %s36 = scalar_select %p35, 0, %s34
      %s37 = ssub.s32 %s24, %s36
      %s38 = ssub.s32 %s25, %s32
      %s39 = sor.u32 %s37, %s38
      %p40 = scmp.eq.s32.totalorder %s39, 0
      %s42 = sadd.s32 %s41, 1
      %s43 = scalar_select %p40, %s41, %s42
      %p46 = pneg %p40
      %p47 = scmp.eq.s32.totalorder %s17, 1
      %p48 = por %p46, %p47
      %p49 = scmp.ne.s32.totalorder %s41, %s44
      %p50 = scmp.eq.s32.totalorder %s17, 0
      %p51 = por %p49, %p50
      %p52 = scmp.ne.s32.totalorder %s41, %s44
      %p53 = scmp.eq.s32.totalorder %s22, 1
      %p54 = por %p52, %p53
      %p55 = scmp.ne.s32.totalorder %s44, %s45
      %p56 = scmp.eq.s32.totalorder %s22, 0
      %p57 = por %p55, %p56
      %p58 = scmp.ne.s32.totalorder %s44, %s45
      %p59 = scmp.eq.s32.totalorder %s23, 1
      %p60 = por %p58, %p59
      %p62 = scmp.ne.s32.totalorder %s45, %s61
      %p63 = scmp.eq.s32.totalorder %s23, 0
      %p64 = por %p62, %p63
      %s65 = ssub.s32 %s24, %s36
      %s66 = ssub.s32 %s25, %s32
      %s67 = sor.u32 %s65, %s66
      %p68 = scmp.eq.s32.totalorder %s67, 0
      %s70 = sadd.s32 %s69, 1
      %s71 = scalar_select %p68, %s69, %s70
      %p74 = pneg %p68
      %p75 = scmp.eq.s32.totalorder %s17, 1
      %p76 = por %p74, %p75
      %p77 = scmp.ne.s32.totalorder %s69, %s72
      %p78 = scmp.eq.s32.totalorder %s17, 0
      %p79 = por %p77, %p78
      %p80 = scmp.ne.s32.totalorder %s69, %s72
      %p81 = scmp.eq.s32.totalorder %s22, 1
      %p82 = por %p80, %p81
      %p83 = scmp.ne.s32.totalorder %s72, %s73
      %p84 = scmp.eq.s32.totalorder %s22, 0
      %p85 = por %p83, %p84
      %p86 = scmp.ne.s32.totalorder %s72, %s73
      %p87 = scmp.eq.s32.totalorder %s23, 1
      %p88 = por %p86, %p87
      %p90 = scmp.ne.s32.totalorder %s73, %s89
      %p91 = scmp.eq.s32.totalorder %s23, 0
      %p92 = por %p90, %p91
      %s93 = ssub.s32 %s24, %s36
      %p94 = scmp.eq.s32.totalorder %s93, 0
      %s96 = sadd.s32 %s95, 1
      %s97 = scalar_select %p94, %s95, %s96
      %p100 = pneg %p94
      %p101 = scmp.eq.s32.totalorder %s17, 1
      %p102 = por %p100, %p101
      %p103 = scmp.ne.s32.totalorder %s95, %s98
      %p104 = scmp.eq.s32.totalorder %s17, 0
      %p105 = por %p103, %p104
      %p106 = scmp.ne.s32.totalorder %s95, %s98
      %p107 = scmp.eq.s32.totalorder %s22, 1
      %p108 = por %p106, %p107
      %p109 = scmp.ne.s32.totalorder %s98, %s99
      %p110 = scmp.eq.s32.totalorder %s22, 0
      %p111 = por %p109, %p110
      %p112 = scmp.ne.s32.totalorder %s98, %s99
      %p113 = scmp.eq.s32.totalorder %s23, 1
      %p114 = por %p112, %p113
      %p116 = scmp.ne.s32.totalorder %s99, %s115
      %p117 = scmp.eq.s32.totalorder %s23, 0
      %p118 = por %p116, %p117
      %p119 = scmp.le.s32.totalorder 1, %s17
      %p120 = scmp.lt.s32.totalorder %s17, 3
      %p121 = pnand %p119, %p120
      %p122 = pneg %p121
      // Predicated region
      $region9: #{tpu_custom_call.1} parent=5 // pred_check
        _
      $region10: #{tpu_custom_call.1} parent=5 // pred_check_branch
        %124 = sbr.rel (%p121) target = $region12
      $region11: #{tpu_custom_call.1} parent=5 // pred_region
        %s125 = ssub.s32 %s17, 1
      $region12: #{tpu_custom_call.1} parent=5 // pred_fallthru
        _
      %p126 = scmp.lt.s32.totalorder %s17, 2
      // Predicated region
      $region13: #{tpu_custom_call.1} parent=5 // pred_check
        %p127 = pneg %p126
      $region14: #{tpu_custom_call.1} parent=5 // pred_check_branch
        %129 = sbr.rel (%p127) target = $region16
      $region15: #{tpu_custom_call.1} parent=5 // pred_region
        // Predicated region
        $region17: #{tpu_custom_call.1} parent=15 // pred_check
          %p130 = pneg %p51
        $region18: #{tpu_custom_call.1} parent=15 // pred_check_branch
          %132 = sbr.rel (%p130) target = $region20
        $region19: #{tpu_custom_call.1} parent=15 // pred_region
          %s133 = sand.u32 %s41, 1
          %s134 = scalar_lea.sflag [#allocation5], %s133
          %s135 = sand.u32 %s41, 1
          %s136 = smul.addr %s135, 4
          %s137 = scalar_lea.vmem [#allocation4], %s136
          %s138 = smul.u32 2, %s25
          %s140 = ssub.s32 64, 64
          %141 = vsyncadd %s134, %s140
          %s142 = smul.addr %s24, 2
          %s143 = sadd.s32 %s138, %s142
          %s144 = smul.addr %s143, 32
          %s145 = scalar_lea.hbm %s0, %s144
          %s147 = sshll.u32 %s137, 4
          %s148 = int_to_ptr.vmem [resolvable:$true] %s147
          %150 = dma.hbm_to_vmem [thread:$0]  %s145, 64, %s148, %s134
        $region20: #{tpu_custom_call.1} parent=15 // pred_fallthru
          _
        // Predicated region
        $region21: #{tpu_custom_call.1} parent=15 // pred_check
          %p151 = pneg %p79
        $region22: #{tpu_custom_call.1} parent=15 // pred_check_branch
          %153 = sbr.rel (%p151) target = $region24
        $region23: #{tpu_custom_call.1} parent=15 // pred_region
          %s154 = sand.u32 %s69, 1
          %s155 = scalar_lea.sflag [#allocation8], %s154
          %s156 = sand.u32 %s69, 1
          %s157 = smul.addr %s156, 2
          %s158 = scalar_lea.vmem [#allocation7], %s157
          %s159 = smul.u32 2, %s25
          %s161 = ssub.s32 32, 32
          %162 = vsyncadd %s155, %s161
          %s163 = smul.addr %s24, 2
          %s164 = sadd.s32 %s159, %s163
          %s165 = smul.addr %s164, 16
          %s166 = scalar_lea.hbm %s1, %s165
          %s168 = sshll.u32 %s158, 4
          %s169 = int_to_ptr.vmem [resolvable:$true] %s168
          %171 = dma.hbm_to_vmem [thread:$0]  %s166, 32, %s169, %s155
        $region24: #{tpu_custom_call.1} parent=15 // pred_fallthru
          _
      $region16: #{tpu_custom_call.1} parent=5 // pred_fallthru
        _
      %p172 = scmp.le.s32.totalorder 1, %s17
      %p173 = scmp.lt.s32.totalorder %s17, 3
      %p174 = pnand %p172, %p173
      %p175 = pneg %p174
      // Predicated region
      $region25: #{tpu_custom_call.1} parent=5 // pred_check
        _
      $region26: #{tpu_custom_call.1} parent=5 // pred_check_branch
        %177 = sbr.rel (%p174) target = $region28
      $region27: #{tpu_custom_call.1} parent=5 // pred_region
        %s178 = ssub.s32 %s17, 1
        %s179 = sand.u32 %s44, 1
        %s180 = scalar_lea.sflag [#allocation5], %s179
        %s181 = sand.u32 %s44, 1
        %s182 = smul.addr %s181, 4
        %s183 = scalar_lea.vmem [#allocation4], %s182
        // Predicated region
        $region29: #{tpu_custom_call.1} parent=27 // pred_check
          %p184 = pneg %p57
        $region30: #{tpu_custom_call.1} parent=27 // pred_check_branch
          %186 = sbr.rel (%p184) target = $region32
        $region31: #{tpu_custom_call.1} parent=27 // pred_region
          %187 = dma.done %s180, 64
        $region32: #{tpu_custom_call.1} parent=27 // pred_fallthru
          _
        %s188 = sand.u32 %s72, 1
        %s189 = scalar_lea.sflag [#allocation8], %s188
        %s190 = sand.u32 %s72, 1
        %s191 = smul.addr %s190, 2
        %s192 = scalar_lea.vmem [#allocation7], %s191
        // Predicated region
        $region33: #{tpu_custom_call.1} parent=27 // pred_check
          %p193 = pneg %p85
        $region34: #{tpu_custom_call.1} parent=27 // pred_check_branch
          %195 = sbr.rel (%p193) target = $region36
        $region35: #{tpu_custom_call.1} parent=27 // pred_region
          %196 = dma.done %s189, 32
        $region36: #{tpu_custom_call.1} parent=27 // pred_fallthru
          _
        %s197 = sand.u32 %s44, 1
        %s198 = scalar_lea.sflag [#allocation5], %s197
        %s199 = sand.u32 %s44, 1
        %s200 = smul.addr %s199, 4
        %s201 = scalar_lea.vmem [#allocation4], %s200
        %p202 = pneg %p57
        %p203 = pneg %p54
        %s204 = sand.u32 %s72, 1
        %s205 = scalar_lea.sflag [#allocation8], %s204
        %s206 = sand.u32 %s72, 1
        %s207 = smul.addr %s206, 2
        %s208 = scalar_lea.vmem [#allocation7], %s207
        %p209 = pneg %p85
        %p210 = pneg %p82
        %p211 = pneg %p111
        %p212 = pneg %p108
        %s213 = sand.u32 %s98, 1
        %s214 = scalar_lea.sflag [#allocation6], %s213
        %s215 = sand.u32 %s98, 1
        %s216 = scalar_lea.vmem [#allocation9], %s215
        %s217 = smul.u32 2, %s27
        %s218 = smul.u32 2, %s27
        %p219 = scmp.eq.s32.totalorder %s27, 0
        // Predicated region
        $region37: #{tpu_custom_call.1} parent=27 // pred_check
          %p220 = pneg %p219
        $region38: #{tpu_custom_call.1} parent=27 // pred_check_branch
          %222 = sbr.rel (%p220) target = $region40
        $region39: #{tpu_custom_call.1} parent=27 // pred_region
          %vm223 = vcmask 24576
          %224 = vst.msk [vmem:[#allocation2] sm:$0x1] %vm223, 0.0
          %225 = vst.msk [vmem:[#allocation3] sm:$0x1] %vm223, 0.0
        $region40: #{tpu_custom_call.1} parent=27 // pred_fallthru
          _
        %v226 = vld [vmem:[%s183] sm:$0xf]
        %v227 = vunpack.c.l.bf16 %v226
        %v228 = vld [vmem:[%s192] sm:$0x3]
        %v230 = vcombine.high %v227, %v227
        %vm232 = vcmask 1043456
        %v233 = vsel %vm232, %v227, -inf
        %v234 = vrot.slane %v233, 4
        %v235 = vmax.f32 %v233, %v234
        %v236 = vrot.slane %v235, 2
        %v237 = vmax.f32 %v235, %v236
        %v238 = vrot.slane %v237, 1
        %v239 = vmax.f32 %v237, %v238
        %v240 = vsel %vm232, %v230, -inf
        %v241 = vrot.slane %v240, 4
        %v242 = vmax.f32 %v240, %v241
        %v243 = vrot.slane %v242, 2
        %v244 = vmax.f32 %v242, %v243
        %v245 = vrot.slane %v244, 1
        %v246 = vmax.f32 %v244, %v245
        %v249 = vcombine.low %v239, %v246
        %v251 = vsub.f32 %v227, %v249
        %v252 = vmul.f32 %v251, 1.442695
        %v253 = vpow.pop %v252
        %v255 = vcombine.high %v253, %v253
        %v257 = vsel %vm232, %v253, 0.0
        %v258 = vrot.slane %v257, 4
        %v259 = vadd.f32 %v257, %v258
        %v260 = vrot.slane %v259, 2
        %v261 = vadd.f32 %v259, %v260
        %v262 = vrot.slane %v261, 1
        %v263 = vadd.f32 %v261, %v262
        %v264 = vsel %vm232, %v255, 0.0
        %v265 = vrot.slane %v264, 4
        %v266 = vadd.f32 %v264, %v265
        %v267 = vrot.slane %v266, 2
        %v268 = vadd.f32 %v266, %v267
        %v269 = vrot.slane %v268, 1
        %v270 = vadd.f32 %v268, %v269
        %v271 = vrcp.pop %v263
        %v272 = vrcp.pop %v270
        %v275 = vcombine.low %v271, %v272
        %v277 = vmul.f32 %v253, %v275
        %v278 = vlaneseq
        %v279 = vshrl.u32 %v278, 7
        %v280 = vlaneseq
        %v281 = vshrl.u32 %v280, 7
        %v282 = vsub.s32 0, %v281
        %v283 = vrot.slane %v228, %v282
        %v284 = vlaneseq
        %v285 = vshrl.u32 %v284, 7
        %v286 = vsub.s32 1, %v285
        %v287 = vrot.slane %v228, %v286
        %vm288 = vcmp.eq.s32.totalorder %v283, %v279
        %vm289 = vcmp.eq.s32.totalorder %v287, %v279
        %v290 = vsel %vm288, 1, 0
        %v291 = vsel %vm289, 1, 0
        %v292 = vcvt.s32.f32 %v290
        %v293 = vcvt.s32.f32 %v291
        %v295 = vcombine.high %v277, %v277
        %v297 = vsel %vm232, %v277, 0.0
        %v298 = vsel %vm232, %v295, 0.0
        %v299 = vadd.f32 %v297, %v298
        %300 = vadd.xlane.f32.xlu0 %v299
        %v301 = vpop.xlane.xlu0 %300
        %v304 = vcombine.low %v292, %v293
        %v306 = vmul.f32 %v277, %v304
        %v308 = vcombine.high %v306, %v306
        %v310 = vsel %vm232, %v306, 0.0
        %v311 = vsel %vm232, %v308, 0.0
        %v312 = vadd.f32 %v310, %v311
        %313 = vadd.xlane.f32.xlu0 %v312
        %v314 = vpop.xlane.xlu0 %313
        %v315 = vmul.f32 %v277, %v277
        %v317 = vcombine.high %v315, %v315
        %v319 = vsel %vm232, %v315, 0.0
        %v320 = vsel %vm232, %v317, 0.0
        %v321 = vadd.f32 %v319, %v320
        %322 = vadd.xlane.f32.xlu0 %v321
        %v323 = vpop.xlane.xlu0 %322
        %v324 = vsel %vm232, %v292, 0.0
        %v325 = vsel %vm232, %v293, 0.0
        %v326 = vadd.f32 %v324, %v325
        %327 = vadd.xlane.f32.xlu0 %v326
        %v328 = vpop.xlane.xlu0 %327
        %v329 = vld [vmem:[#allocation2] sm:$0x1]
        %v330 = vmul.f32 %v301, 1e-06
        %v331 = vadd.f32 %v314, %v330
        %v333 = vlaneseq
        %v334 = vshrl.u32 %v333, 7
        %v335 = vsub.s32 0, %v334
        %v336 = vrot.slane %v331, %v335
        %v337 = vlaneseq
        %v338 = vshrl.u32 %v337, 7
        %v339 = vsub.s32 1, %v338
        %v340 = vrot.slane %v331, %v339
        %v341 = vlaneseq
        %v342 = vshrl.u32 %v341, 7
        %v343 = vsub.s32 2, %v342
        %v344 = vrot.slane %v331, %v343
        %v345 = vlaneseq
        %v346 = vshrl.u32 %v345, 7
        %v347 = vsub.s32 3, %v346
        %v348 = vrot.slane %v331, %v347
        %v349 = vcombine.low %v336, %v340
        %v350 = vcombine.low %v344, %v348
        %v352 = vunpack.c.l.s4 1966171168
        %v353 = vunpack.c.0.s8 %v352
        %v354 = vlaneseq
        %v355 = vshrl.u32 %v354, 7
        %v356 = vsub.s32 %v353, %v355
        %v357 = vrot.slane %v349, %v356
        %v359 = vunpack.c.l.s4 1966171168
        %v360 = vunpack.c.0.s8 %v359
        %v361 = vlaneseq
        %v362 = vshrl.u32 %v361, 7
        %v363 = vsub.s32 %v360, %v362
        %v364 = vrot.slane %v350, %v363
        %v365 = vcombine.low %v357, %v364
        %v367 = vunpack.c.l.s4 1966171168
        %v368 = vunpack.c.0.s8 %v367
        %v369 = vlaneseq
        %v370 = vshrl.u32 %v369, 7
        %v371 = vsub.s32 %v368, %v370
        %v372 = vrot.slane %v365, %v371
        %373 = vset.pattern.permute.xlu0 0
        %374 = vperm.xlu0 %373, %v372
        %v375 = vpop.permute.xlu0 %374
        %v376 = vlaneseq
        %v377 = vand.u32 %v376, 127
        %v378 = vlaneseq
        %v379 = vshrl.u32 %v378, 7
        %v380 = vsub.s32 %v377, %v379
        %v381 = vrot.slane %v375, %v380
        %v383 = vunpack.c.l.s4 1966171168
        %v384 = vunpack.c.0.s8 %v383
        %v385 = vlaneseq
        %v386 = vshrl.u32 %v385, 7
        %v387 = vsub.s32 %v384, %v386
        %v388 = vrot.slane %v381, %v387
        %v390 = vunpack.c.l.s4 1966171168
        %v391 = vunpack.c.0.s8 %v390
        %v392 = vlaneseq
        %v393 = vshrl.u32 %v392, 7
        %v394 = vsub.s32 %v391, %v393
        %v395 = vrot.slane %v388, %v394
        %v397 = vadd.f32 %v329, %v395
        %vm398 = vcmask 24576
        %399 = vst.msk [vmem:[#allocation2] sm:$0x1] %vm398, %v397
        %v400 = vld [vmem:[#allocation3] sm:$0x1]
        %v401 = vmul.f32 %v328, 1.000002
        %v402 = vadd.f32 %v323, %v401
        %v403 = vadd.f32 %v402, 2.56e-10
        %v405 = vlaneseq
        %v406 = vshrl.u32 %v405, 7
        %v407 = vsub.s32 0, %v406
        %v408 = vrot.slane %v403, %v407
        %v409 = vlaneseq
        %v410 = vshrl.u32 %v409, 7
        %v411 = vsub.s32 1, %v410
        %v412 = vrot.slane %v403, %v411
        %v413 = vlaneseq
        %v414 = vshrl.u32 %v413, 7
        %v415 = vsub.s32 2, %v414
        %v416 = vrot.slane %v403, %v415
        %v417 = vlaneseq
        %v418 = vshrl.u32 %v417, 7
        %v419 = vsub.s32 3, %v418
        %v420 = vrot.slane %v403, %v419
        %v421 = vcombine.low %v408, %v412
        %v422 = vcombine.low %v416, %v420
        %v424 = vunpack.c.l.s4 1966171168
        %v425 = vunpack.c.0.s8 %v424
        %v426 = vlaneseq
        %v427 = vshrl.u32 %v426, 7
        %v428 = vsub.s32 %v425, %v427
        %v429 = vrot.slane %v421, %v428
        %v431 = vunpack.c.l.s4 1966171168
        %v432 = vunpack.c.0.s8 %v431
        %v433 = vlaneseq
        %v434 = vshrl.u32 %v433, 7
        %v435 = vsub.s32 %v432, %v434
        %v436 = vrot.slane %v422, %v435
        %v437 = vcombine.low %v429, %v436
        %v439 = vunpack.c.l.s4 1966171168
        %v440 = vunpack.c.0.s8 %v439
        %v441 = vlaneseq
        %v442 = vshrl.u32 %v441, 7
        %v443 = vsub.s32 %v440, %v442
        %v444 = vrot.slane %v437, %v443
        %445 = vset.pattern.permute.xlu0 0
        %446 = vperm.xlu0 %445, %v444
        %v447 = vpop.permute.xlu0 %446
        %v448 = vlaneseq
        %v449 = vshrl.u32 %v448, 7
        %v450 = vsub.s32 %v377, %v449
        %v451 = vrot.slane %v447, %v450
        %v453 = vunpack.c.l.s4 1966171168
        %v454 = vunpack.c.0.s8 %v453
        %v455 = vlaneseq
        %v456 = vshrl.u32 %v455, 7
        %v457 = vsub.s32 %v454, %v456
        %v458 = vrot.slane %v451, %v457
        %v460 = vunpack.c.l.s4 1966171168
        %v461 = vunpack.c.0.s8 %v460
        %v462 = vlaneseq
        %v463 = vshrl.u32 %v462, 7
        %v464 = vsub.s32 %v461, %v463
        %v465 = vrot.slane %v458, %v464
        %v467 = vadd.f32 %v400, %v465
        %468 = vst.msk [vmem:[#allocation3] sm:$0x1] %vm398, %v467
        // Predicated region
        $region41: #{tpu_custom_call.1} parent=27 // pred_check
          %p469 = pneg %p219
        $region42: #{tpu_custom_call.1} parent=27 // pred_check_branch
          %471 = sbr.rel (%p469) target = $region44
        $region43: #{tpu_custom_call.1} parent=27 // pred_region
          %v472 = vld [vmem:[#allocation2] sm:$0x1]
          %v473 = vadd.f32 %v472, 1.0
          %v474 = vld [vmem:[#allocation3] sm:$0x1]
          %v475 = vadd.f32 %v474, 1.0
          %v476 = vrcp.pop %v475
          %v477 = vmul.f32 %v473, %v476
          %v478 = vsub.f32 1.0, %v477
          %479 = vst.msk [vmem:[%s216] sm:$0x1] %vm398, %v478
        $region44: #{tpu_custom_call.1} parent=27 // pred_fallthru
          _
        %s480 = sand.u32 %s98, 1
        %s481 = scalar_lea.sflag [#allocation6], %s480
        %s482 = sand.u32 %s98, 1
        %s483 = scalar_lea.vmem [#allocation9], %s482
        // Predicated region
        $region45: #{tpu_custom_call.1} parent=27 // pred_check
          %p484 = pneg %p108
        $region46: #{tpu_custom_call.1} parent=27 // pred_check_branch
          %486 = sbr.rel (%p484) target = $region48
        $region47: #{tpu_custom_call.1} parent=27 // pred_region
          %s488 = ssub.s32 16, 16
          %489 = vsyncadd %s481, %s488
          %s490 = smul.addr %s26, 16
          %s491 = scalar_lea.hbm %s2, %s490
          %s493 = sshll.u32 %s483, 4
          %s494 = int_to_ptr.vmem [resolvable:$true] %s493
          %496 = dma.vmem_to_hbm [thread:$0]  %s494, 16, %s491, %s481
        $region48: #{tpu_custom_call.1} parent=27 // pred_fallthru
          _
      $region28: #{tpu_custom_call.1} parent=5 // pred_fallthru
        _
      %p497 = scmp.le.s32.totalorder 2, %s17
      // Predicated region
      $region49: #{tpu_custom_call.1} parent=5 // pred_check
        %p498 = pneg %p497
      $region50: #{tpu_custom_call.1} parent=5 // pred_check_branch
        %500 = sbr.rel (%p498) target = $region52
      $region51: #{tpu_custom_call.1} parent=5 // pred_region
        %s501 = ssub.s32 %s17, 2
        // Predicated region
        $region53: #{tpu_custom_call.1} parent=51 // pred_check
          %p502 = pneg %p114
        $region54: #{tpu_custom_call.1} parent=51 // pred_check_branch
          %504 = sbr.rel (%p502) target = $region56
        $region55: #{tpu_custom_call.1} parent=51 // pred_region
          %s505 = sand.u32 %s99, 1
          %s506 = scalar_lea.sflag [#allocation6], %s505
          %s507 = sand.u32 %s99, 1
          %s508 = scalar_lea.vmem [#allocation9], %s507
          %509 = dma.done %s506, 16
        $region56: #{tpu_custom_call.1} parent=51 // pred_fallthru
          _
      $region52: #{tpu_custom_call.1} parent=5 // pred_fallthru
        _
    $region6: #{tpu_custom_call.1} parent=1 // loop_footer
      %s21 = sadd.s32 1, %s17
    $region7: #{tpu_custom_call.1} parent=1 // loop_footer_branch
      %16 = sbr.rel target = $region3
    $region8: #{tpu_custom_call.1} parent=1 // loop_exit
      _
    %510 = vsyncpa [#allocation5], 1
    %s511 = scalar_lea.sflag [#allocation5], 1
    %512 = vsyncpa %s511, 1
    %513 = vsyncpa [#allocation8], 1
    %s514 = scalar_lea.sflag [#allocation8], 1
    %515 = vsyncpa %s514, 1
    %516 = vsyncpa [#allocation6], 1
    %s517 = scalar_lea.sflag [#allocation6], 1
    %518 = vsyncpa %s517, 1

</llo_original>
